<compile_context>
chip_gen: v6e
topology: v6e:2x2x1
jax: 0.10.0
libtpu: 0.0.40
codegen_flags: <defaults>
</compile_context>

<pallas_src>
import functools

import numpy as np
import jax
import jax.numpy as jnp
from jax.experimental import pallas as pl
from jax.experimental.pallas import tpu as pltpu


def _cdiv(a, b):
    return -(-a // b)


def _round_up(v, m):
    return _cdiv(v, m) * m


def _pick_bt(B, Np, Din, Dout, stream_bytes, out_bytes, flat_agg,
             target_rows=256, vmem_budget=20 * 1024 * 1024):
    """Graphs packed per grid step.

    Targets >= target_rows flattened rows (fills a 256-wide MXU and amortizes
    the ~0.35us per-step overhead), bounded by a conservative per-step VMEM
    budget that also fits v7x (64 MiB physical / 32 MiB default scoped).
    """
    bt = min(B, max(1, _cdiv(target_rows, Np)))

    def step_bytes(b):
        rows = b * Np
        io = rows * (Din * stream_bytes + Np * stream_bytes + 4 + Dout * out_bytes)
        const = Din * Dout * stream_bytes + Dout * 4
        tmp = 2 * rows * max(Din, Dout) * 4              # f32 intermediates
        if flat_agg:
            const += rows * rows * stream_bytes + Np * rows * stream_bytes
            tmp += rows * rows * 4                       # f32 block-diag temp
        return 2 * io + 2 * const + tmp                  # x2: double buffering

    while bt > 1 and step_bytes(bt) > vmem_budget:
        bt = (bt + 1) // 2
    return bt


def _gcn_kernel(x_ref, adj_ref, d_ref, w_ref, b_ref, *rest,
                w_first, flat_agg, replicate, bt, n, mxu_dtype):
    if flat_agg and replicate:
        e_ref, mask_ref, o_ref = rest
    else:
        (o_ref,) = rest

    x = x_ref[...]            # (rows, Din)   streaming dtype (pre-cast)
    d = d_ref[...]            # (rows, 1)     f32, diag of the degree matrix
    w = w_ref[...]            # (Din, Dout)   streaming dtype (pre-cast)
    b = b_ref[...]            # (1, Dout)     f32
    rows = bt * n

    if flat_agg:
        # One block-diagonal aggregation matmul over the whole tile:
        #   BD[(g,i),(h,j)] = adj[g, i, j] if g == h else 0
        adj2 = adj_ref[...]                               # (rows, n)
        if replicate:
            # Replicate adj across column blocks with a tiny constant matmul
            # (E[c, q] = [q % n == c]) and zero off-diagonal blocks with a
            # constant mask.  MXU + VPU only; no lane-dim concats/reshapes.
            a_wide = jnp.dot(adj2, e_ref[...],
                             preferred_element_type=jnp.float32)
            bd = (a_wide * mask_ref[...]).astype(mxu_dtype)
        else:
            bd = adj2                                     # bt == 1

        def aggregate(v):                                 # (rows, k) -> f32
            return jnp.dot(bd, v, preferred_element_type=jnp.float32)
    else:
        adj3 = adj_ref[...]                               # (bt, n, n)

        def aggregate(v):
            v3 = v.reshape(bt, n, v.shape[-1])
            y = jnp.einsum("gij,gjk->gik", adj3, v3,
                           preferred_element_type=jnp.float32)
            return y.reshape(rows, v.shape[-1])

    if w_first:
        # H = d ⊙ (A_bd @ (d ⊙ (x @ W))) + b      (cheaper when Dout < Din)
        xw = jnp.dot(x, w, preferred_element_type=jnp.float32)
        y = aggregate((d * xw).astype(mxu_dtype))
        h = d * y + b
    else:
        # H = (d ⊙ (A_bd @ (d ⊙ x))) @ W + b      (cheaper when Din <= Dout)
        y = aggregate((d * x).astype(mxu_dtype))
        h = jnp.dot((d * y).astype(mxu_dtype), w,
                    preferred_element_type=jnp.float32) + b

    o_ref[...] = h.astype(o_ref.dtype)


def gcn_forward(x, adj, D, W, bias, *, mxu_dtype=jnp.bfloat16,
                target_rows=256, flat_agg_max_n=64):
    """GCN forward matching GraphConvLayer: ((D @ adj @ D) @ x) @ W + b.

    x    : (B, N, Din)   node features
    adj  : (B, N, N)     adjacency
    D    : (B, N, N)     degree matrix.  Contract: D is diagonal (as a degree
                         matrix is); only diag(D) is read by the kernel.
    W    : (Din, Dout)   nn.Linear weight, already transposed (PyTorch (Dout, Din)).
    bias : (Dout,)
    mxu_dtype: MXU/HBM streaming dtype for x/adj/W (bf16 default; f32 escape
               hatch for exact accumulation across stacked layers).
    """
    B, N, Din = x.shape
    Dout = W.shape[1]
    out_dtype = x.dtype

    stream_bytes = np.dtype(mxu_dtype).itemsize
    out_bytes = np.dtype(out_dtype).itemsize

    # Node-axis padding to the streaming dtype's sublane multiple keeps all
    # wrapper-side reshapes layout-preserving (no in-kernel relayouts).
    sub = 8 * max(1, 4 // stream_bytes)
    Np = _round_up(N, sub)

    # Only the diagonal of the degree matrix is used (documented contract).
    d = jnp.diagonal(D, axis1=-2, axis2=-1).astype(jnp.float32)     # (B, N)

    if Np != N:
        x = jnp.pad(x, ((0, 0), (0, Np - N), (0, 0)))
        adj = jnp.pad(adj, ((0, 0), (0, Np - N), (0, Np - N)))
        d = jnp.pad(d, ((0, 0), (0, Np - N)))

    # Small graphs: aggregate Bt graphs with one block-diagonal matmul.
    flat_agg = Np <= flat_agg_max_n

    bt = _pick_bt(B, Np, Din, Dout, stream_bytes, out_bytes, flat_agg,
                  target_rows=target_rows)
    if B > 1:
        bt = min(bt, _cdiv(B, 2))   # >= 2 grid steps so both v7x TCs get work
    grid_n = _cdiv(B, bt)
    bt = _cdiv(B, grid_n)           # rebalance -> minimal batch padding
    Bp = bt * grid_n

    if Bp != B:
        x = jnp.pad(x, ((0, Bp - B), (0, 0), (0, 0)))
        adj = jnp.pad(adj, ((0, Bp - B), (0, 0), (0, 0)))
        d = jnp.pad(d, ((0, Bp - B), (0, 0)))

    rows = bt * Np
    rows_total = Bp * Np
    replicate = flat_agg and bt > 1

    # One-time casts / reshapes in the wrapper (removes per-step VPU casts
    # and halves the dominant adj DMA stream for bf16).
    x2 = x.reshape(rows_total, Din).astype(mxu_dtype)
    d2 = d.reshape(rows_total, 1)
    Wm = W.astype(mxu_dtype)
    b2 = bias.reshape(1, Dout).astype(jnp.float32)

    # Association putting the narrower width through the N^2 aggregation.
    w_first = Dout < Din
    mid = Dout if w_first else Din

    operands = [x2]
    in_specs = [pl.BlockSpec((rows, Din), lambda i: (i, 0))]

    if flat_agg:
        operands.append(adj.reshape(rows_total, Np).astype(mxu_dtype))
        in_specs.append(pl.BlockSpec((rows, Np), lambda i: (i, 0)))
    else:
        operands.append(adj.astype(mxu_dtype))
        in_specs.append(pl.BlockSpec((bt, Np, Np), lambda i: (i, 0, 0)))

    operands += [d2, Wm, b2]
    in_specs += [
        pl.BlockSpec((rows, 1), lambda i: (i, 0)),
        pl.BlockSpec((Din, Dout), lambda i: (0, 0)),
        pl.BlockSpec((1, Dout), lambda i: (0, 0)),
    ]

    if replicate:
        # Constants for the in-kernel block-diagonal construction (loaded once;
        # their block index never changes so they are not re-DMA'd per step).
        q = jnp.arange(rows)
        e_mat = (q[None, :] % Np == jnp.arange(Np)[:, None]).astype(mxu_dtype)
        blk = q // Np
        mask = (blk[:, None] == blk[None, :]).astype(mxu_dtype)
        operands += [e_mat, mask]
        in_specs += [pl.BlockSpec((Np, rows), lambda i: (0, 0)),
                     pl.BlockSpec((rows, rows), lambda i: (0, 0))]

    # Advisory cost estimate for the XLA scheduler.
    if flat_agg:
        agg_flops = 2 * rows_total * rows * mid
        if replicate:
            agg_flops += 2 * rows_total * rows * Np
    else:
        agg_flops = 2 * Bp * Np * Np * mid
    flops = int(agg_flops + 2 * rows_total * Din * Dout)
    bytes_accessed = int(sum(int(o.size) * o.dtype.itemsize for o in operands)
                         + rows_total * Dout * out_bytes)

    kernel = functools.partial(
        _gcn_kernel, w_first=w_first, flat_agg=flat_agg, replicate=replicate,
        bt=bt, n=Np, mxu_dtype=mxu_dtype)

    out2 = pl.pallas_call(
        kernel,
        out_shape=jax.ShapeDtypeStruct((rows_total, Dout), out_dtype),
        grid_spec=pltpu.PrefetchScalarGridSpec(
            num_scalar_prefetch=0,
            grid=(grid_n,),
            in_specs=in_specs,
            out_specs=pl.BlockSpec((rows, Dout), lambda i: (i, 0)),
        ),
        compiler_params=pltpu.CompilerParams(
            dimension_semantics=("parallel",),
        ),
        cost_estimate=pl.CostEstimate(
            flops=flops, transcendentals=0, bytes_accessed=bytes_accessed),
    )(*operands)

    out = out2.reshape(Bp, Np, Dout)
    if Bp != B or Np != N:
        out = out[:B, :N, :]      # only pays an extra pass if padding occurred
    return out


def gcn_reference(x, adj, D, W, bias):
    """Faithful dense f32 reference: (D @ adj @ D @ x) @ W + b."""
    weights = jnp.einsum("bij,bjk->bik", D, adj)
    weights = jnp.einsum("bij,bjk->bik", weights, D)
    wx = jnp.einsum("bij,bjd->bid", weights, x)
    return wx @ W + bias


def _make_inputs(key, B, N, Din, Dout):
    kx, kadj, kw, kb = jax.random.split(key, 4)
    x = jax.random.normal(kx, (B, N, Din), dtype=jnp.float32)
    # Symmetric 0/1 adjacency with self loops; D = deg^{-1/2} diagonal.
    a = (jax.random.uniform(kadj, (B, N, N)) > 0.5).astype(jnp.float32)
    adj = jnp.clip(a + jnp.transpose(a, (0, 2, 1)) + jnp.eye(N)[None], 0.0, 1.0)
    deg = adj.sum(axis=-1)
    D = jnp.einsum("bi,ij->bij", 1.0 / jnp.sqrt(deg), jnp.eye(N))
    # nn.Linear(Din, Dout): PyTorch stores weight (Dout, Din); kernel takes W.T.
    W = jax.random.normal(kw, (Din, Dout), dtype=jnp.float32) * 0.1
    bias = jax.random.normal(kb, (Dout,), dtype=jnp.float32) * 0.1
    return x, adj, D, W, bias


if __name__ == "__main__":
    Din, Dout = 16, 32
    k1, k2, k3 = jax.random.split(jax.random.PRNGKey(0), 3)

    # Case 1: module-sized demo (B=2 graphs, N=8 nodes per graph).
    x, adj, D, W, bias = _make_inputs(k1, 2, 8, Din, Dout)
    ref = gcn_reference(x, adj, D, W, bias)

    out_f32 = jax.block_until_ready(
        gcn_forward(x, adj, D, W, bias, mxu_dtype=jnp.float32))
    assert out_f32.shape == (2, 8, Dout)
    assert jnp.allclose(out_f32, ref, atol=1e-4, rtol=1e-4), "f32 mismatch (case 1)"

    out_bf16 = jax.block_until_ready(gcn_forward(x, adj, D, W, bias))
    assert out_bf16.shape == (2, 8, Dout)
    assert jnp.allclose(out_bf16, ref, atol=1e-2, rtol=1e-2), "bf16 mismatch (case 1)"

    # Case 2: more graphs -> exercises the packed block-diagonal aggregation
    # (Bt > 1: constant replication matmul + block mask inside the kernel).
    x, adj, D, W, bias = _make_inputs(k2, 8, 8, Din, Dout)
    ref = gcn_reference(x, adj, D, W, bias)
    out_f32 = jax.block_until_ready(
        gcn_forward(x, adj, D, W, bias, mxu_dtype=jnp.float32))
    assert jnp.allclose(out_f32, ref, atol=1e-4, rtol=1e-4), "f32 mismatch (case 2)"
    out_bf16 = jax.block_until_ready(gcn_forward(x, adj, D, W, bias))
    assert jnp.allclose(out_bf16, ref, atol=1e-2, rtol=1e-2), "bf16 mismatch (case 2)"

    # Case 3: larger graphs (N > 64) -> exercises the batched-einsum path.
    x, adj, D, W, bias = _make_inputs(k3, 2, 72, Din, Dout)
    ref = gcn_reference(x, adj, D, W, bias)
    out_f32 = jax.block_until_ready(
        gcn_forward(x, adj, D, W, bias, mxu_dtype=jnp.float32))
    assert jnp.allclose(out_f32, ref, atol=1e-4, rtol=1e-4), "f32 mismatch (case 3)"

    print("KERNEL_OK")
</pallas_src>

<mosaic_0001>
module attributes {stable_mosaic.version = 11 : i64} {
  func.func @_gcn_kernel(%arg0: i32, %arg1: memref<8x16xf32, #tpu.memory_space<vmem>>, %arg2: memref<8x8xf32, #tpu.memory_space<vmem>>, %arg3: memref<8x1xf32, #tpu.memory_space<vmem>>, %arg4: memref<16x32xf32, #tpu.memory_space<vmem>>, %arg5: memref<1x32xf32, #tpu.memory_space<vmem>>, %arg6: memref<8x32xf32, #tpu.memory_space<vmem>>) attributes {dimension_semantics = [#tpu.dimension_semantics<parallel>], iteration_bounds = array<i64: 2>, scalar_prefetch = 0 : i64, scratch_operands = 0 : i64, tpu.core_type = #tpu.core_type<tc>, window_params = [{transform_indices = @transform_0, window_bounds = array<i64: 8, 16>}, {transform_indices = @transform_1, window_bounds = array<i64: 8, 8>}, {transform_indices = @transform_2, window_bounds = array<i64: 8, 1>}, {pipeline_mode = #tpu.pipeline_mode<synchronous>, transform_indices = @transform_3, window_bounds = array<i64: 16, 32>}, {pipeline_mode = #tpu.pipeline_mode<synchronous>, transform_indices = @transform_4, window_bounds = array<i64: 1, 32>}, {transform_indices = @transform_5, window_bounds = array<i64: 8, 32>}]} {
    %c0 = arith.constant 0 : index
    %c0_0 = arith.constant 0 : index
    %0 = vector.load %arg1[%c0, %c0_0] : memref<8x16xf32, #tpu.memory_space<vmem>>, vector<8x16xf32>
    %c0_1 = arith.constant 0 : index
    %c0_2 = arith.constant 0 : index
    %1 = vector.load %arg3[%c0_1, %c0_2] : memref<8x1xf32, #tpu.memory_space<vmem>>, vector<8x1xf32>
    %c0_3 = arith.constant 0 : index
    %c0_4 = arith.constant 0 : index
    %2 = vector.load %arg4[%c0_3, %c0_4] : memref<16x32xf32, #tpu.memory_space<vmem>>, vector<16x32xf32>
    %c0_5 = arith.constant 0 : index
    %c0_6 = arith.constant 0 : index
    %3 = vector.load %arg5[%c0_5, %c0_6] : memref<1x32xf32, #tpu.memory_space<vmem>>, vector<1x32xf32>
    %c0_7 = arith.constant 0 : index
    %c0_8 = arith.constant 0 : index
    %4 = vector.load %arg2[%c0_7, %c0_8] : memref<8x8xf32, #tpu.memory_space<vmem>>, vector<8x8xf32>
    %5 = vector.broadcast %1 : vector<8x1xf32> to vector<8x16xf32>
    %6 = arith.mulf %5, %0 : vector<8x16xf32>
    %cst = arith.constant dense<0.000000e+00> : vector<8x16xf32>
    %7 = tpu.matmul %4, %6, %cst {dimension_numbers = #tpu.dot_dimension_numbers<[1], [0], [0], [1], [0, 0, 1, 1], [], []>} : vector<8x8xf32>, vector<8x16xf32>, vector<8x16xf32> -> vector<8x16xf32>
    %8 = vector.broadcast %1 : vector<8x1xf32> to vector<8x16xf32>
    %9 = arith.mulf %8, %7 : vector<8x16xf32>
    %cst_9 = arith.constant dense<0.000000e+00> : vector<8x32xf32>
    %10 = tpu.matmul %9, %2, %cst_9 {dimension_numbers = #tpu.dot_dimension_numbers<[1], [0], [0], [1], [0, 0, 1, 1], [], []>} : vector<8x16xf32>, vector<16x32xf32>, vector<8x32xf32> -> vector<8x32xf32>
    %11 = vector.broadcast %3 : vector<1x32xf32> to vector<8x32xf32>
    %12 = arith.addf %10, %11 : vector<8x32xf32>
    %c0_10 = arith.constant 0 : index
    %c0_11 = arith.constant 0 : index
    %13 = vector.load %arg6[%c0_10, %c0_11] : memref<8x32xf32, #tpu.memory_space<vmem>>, vector<8x32xf32>
    tpu.vector_store %arg6[%c0_10, %c0_11], %12 {strides = array<i32>} : memref<8x32xf32, #tpu.memory_space<vmem>>, vector<8x32xf32>,
    return
  }
  func.func @transform_0(%arg0: i32) -> (i32, i32) {
    %c0_i32 = arith.constant 0 : i32
    %c0_i32_0 = arith.constant 0 : i32
    return %arg0, %c0_i32 : i32, i32
  }
  func.func @transform_1(%arg0: i32) -> (i32, i32) {
    %c0_i32 = arith.constant 0 : i32
    %c0_i32_0 = arith.constant 0 : i32
    return %arg0, %c0_i32 : i32, i32
  }
  func.func @transform_2(%arg0: i32) -> (i32, i32) {
    %c0_i32 = arith.constant 0 : i32
    %c0_i32_0 = arith.constant 0 : i32
    return %arg0, %c0_i32 : i32, i32
  }
  func.func @transform_3(%arg0: i32) -> (i32, i32) {
    %c0_i32 = arith.constant 0 : i32
    %c0_i32_0 = arith.constant 0 : i32
    %c0_i32_1 = arith.constant 0 : i32
    return %c0_i32, %c0_i32_0 : i32, i32
  }
  func.func @transform_4(%arg0: i32) -> (i32, i32) {
    %c0_i32 = arith.constant 0 : i32
    %c0_i32_0 = arith.constant 0 : i32
    %c0_i32_1 = arith.constant 0 : i32
    return %c0_i32, %c0_i32_0 : i32, i32
  }
  func.func @transform_5(%arg0: i32) -> (i32, i32) {
    %c0_i32 = arith.constant 0 : i32
    %c0_i32_0 = arith.constant 0 : i32
    return %arg0, %c0_i32 : i32, i32
  }
}

</mosaic_0001>

<llo_original>
// kernel: tpu_custom_call.1
$region0: #{tpu_custom_call.1}
  #allocation0 [shape = 'u32[]', space=smem, size = 0x4, offset = 0x4, fixed_abs, tag = 'smem constant byte address 0x4 - core index']
  #allocation1 [shape = 'u32[144,128]{1,0:T(1,128)}', space=vmem, size = 0x12000, scoped, tag = 'internal scratch']
  %s0 = inlined_call_operand.vmem [shape: f32[16,16], index: 0, kind: input, shape index: {}]
  %s1 = inlined_call_operand.vmem [shape: f32[16,8], index: 1, kind: input, shape index: {}]
  %s2 = inlined_call_operand.vmem [shape: f32[16,1], index: 2, kind: input, shape index: {}]
  %s3 = inlined_call_operand.vmem [shape: f32[16,32], index: 3, kind: input, shape index: {}]
  %s4 = inlined_call_operand.vmem [shape: f32[1,32], index: 4, kind: input, shape index: {}]
  %s5 = inlined_call_operand.hbm [shape: f32[16,32], index: 5, kind: output, shape index: {}]
  %s6 = sld [smem:[#allocation0]]
  $region53: #{tpu_custom_call.1} parent=0
    _
  %s8 = ssub.s32 1, %s6
  %s9 = scalar_select 0, %s8, %s6
  $region1: #{tpu_custom_call.1} parent=0
    #allocation2 [shape = 'u8[8192]{0}', space=vmem, size = 0x2000, scoped, tag = 'output window, operand 0']
    #allocation3 [shape = 's32[2]{0}', space=sflag, size = 0x8, scoped, tag = 'scoped memory for tpu_custom_call.1']
    %10 = vsyncpa [#allocation3], 0
    %s11 = scalar_lea.sflag [#allocation3], 1
    %12 = vsyncpa %s11, 0
    loop: start=0, step=1, limit=4
    $region2: #{tpu_custom_call.1} parent=1 // loop_pre_header
      _
    $region3: #{tpu_custom_call.1} parent=1 // loop_header
      %s14 = sphi 0, %s18
      %p15 = scmp.ge.s32.totalorder %s14, 4
      %s24 = sphi 0, %s26
      %s27 = sphi 0, %s24
      %s28 = sphi 0, %s27
      %s44 = sphi 0, %s28
      %s50 = sphi 0, %s52
      %s53 = sphi 0, %s50
      %s54 = sphi 0, %s53
      %s70 = sphi 0, %s54
      %s76 = sphi 0, %s78
      %s79 = sphi 0, %s76
      %s80 = sphi 0, %s79
      %s96 = sphi 0, %s80
      %s100 = sphi 0, %s100
      %s102 = sphi 0, %s100
      %s103 = sphi 0, %s102
      %s117 = sphi 0, %s103
      %s121 = sphi 0, %s121
      %s123 = sphi 0, %s121
      %s124 = sphi 0, %s123
      %s138 = sphi 0, %s124
      %s144 = sphi 0, %s146
      %s147 = sphi 0, %s144
      %s148 = sphi 0, %s147
      %s164 = sphi 0, %s148
    $region4: #{tpu_custom_call.1} parent=1 // loop_header_branch
      %17 = sbr.rel (%p15) target = $region8
    $region5: #{tpu_custom_call.1} parent=1 // loop_body
      %s19 = ssub.s32 %s14, 1
      %s20 = ssub.s32 %s14, 2
      %s21 = sadd.s32 %s14, 1
      %s22 = ssub.s32 %s14, %s21
      %p23 = scmp.eq.s32.totalorder %s22, 0
      %s25 = sadd.s32 %s24, 1
      %s26 = scalar_select %p23, %s24, %s25
      %p29 = pneg %p23
      %p30 = scmp.eq.s32.totalorder %s14, 1
      %p31 = por %p29, %p30
      %p32 = scmp.ne.s32.totalorder %s24, %s27
      %p33 = scmp.eq.s32.totalorder %s14, 0
      %p34 = por %p32, %p33
      %p35 = scmp.ne.s32.totalorder %s24, %s27
      %p36 = scmp.eq.s32.totalorder %s19, 1
      %p37 = por %p35, %p36
      %p38 = scmp.ne.s32.totalorder %s27, %s28
      %p39 = scmp.eq.s32.totalorder %s19, 0
      %p40 = por %p38, %p39
      %p41 = scmp.ne.s32.totalorder %s27, %s28
      %p42 = scmp.eq.s32.totalorder %s20, 1
      %p43 = por %p41, %p42
      %p45 = scmp.ne.s32.totalorder %s28, %s44
      %p46 = scmp.eq.s32.totalorder %s20, 0
      %p47 = por %p45, %p46
      %s48 = ssub.s32 %s14, %s21
      %p49 = scmp.eq.s32.totalorder %s48, 0
      %s51 = sadd.s32 %s50, 1
      %s52 = scalar_select %p49, %s50, %s51
      %p55 = pneg %p49
      %p56 = scmp.eq.s32.totalorder %s14, 1
      %p57 = por %p55, %p56
      %p58 = scmp.ne.s32.totalorder %s50, %s53
      %p59 = scmp.eq.s32.totalorder %s14, 0
      %p60 = por %p58, %p59
      %p61 = scmp.ne.s32.totalorder %s50, %s53
      %p62 = scmp.eq.s32.totalorder %s19, 1
      %p63 = por %p61, %p62
      %p64 = scmp.ne.s32.totalorder %s53, %s54
      %p65 = scmp.eq.s32.totalorder %s19, 0
      %p66 = por %p64, %p65
      %p67 = scmp.ne.s32.totalorder %s53, %s54
      %p68 = scmp.eq.s32.totalorder %s20, 1
      %p69 = por %p67, %p68
      %p71 = scmp.ne.s32.totalorder %s54, %s70
      %p72 = scmp.eq.s32.totalorder %s20, 0
      %p73 = por %p71, %p72
      %s74 = ssub.s32 %s14, %s21
      %p75 = scmp.eq.s32.totalorder %s74, 0
      %s77 = sadd.s32 %s76, 1
      %s78 = scalar_select %p75, %s76, %s77
      %p81 = pneg %p75
      %p82 = scmp.eq.s32.totalorder %s14, 1
      %p83 = por %p81, %p82
      %p84 = scmp.ne.s32.totalorder %s76, %s79
      %p85 = scmp.eq.s32.totalorder %s14, 0
      %p86 = por %p84, %p85
      %p87 = scmp.ne.s32.totalorder %s76, %s79
      %p88 = scmp.eq.s32.totalorder %s19, 1
      %p89 = por %p87, %p88
      %p90 = scmp.ne.s32.totalorder %s79, %s80
      %p91 = scmp.eq.s32.totalorder %s19, 0
      %p92 = por %p90, %p91
      %p93 = scmp.ne.s32.totalorder %s79, %s80
      %p94 = scmp.eq.s32.totalorder %s20, 1
      %p95 = por %p93, %p94
      %p97 = scmp.ne.s32.totalorder %s80, %s96
      %p98 = scmp.eq.s32.totalorder %s20, 0
      %p99 = por %p97, %p98
      %s101 = sadd.s32 %s100, 1
      %p104 = scmp.eq.s32.totalorder %s14, 1
      %p105 = scmp.ne.s32.totalorder %s100, %s102
      %p106 = scmp.eq.s32.totalorder %s14, 0
      %p107 = por %p105, %p106
      %p108 = scmp.ne.s32.totalorder %s100, %s102
      %p109 = scmp.eq.s32.totalorder %s19, 1
      %p110 = por %p108, %p109
      %p111 = scmp.ne.s32.totalorder %s102, %s103
      %p112 = scmp.eq.s32.totalorder %s19, 0
      %p113 = por %p111, %p112
      %p114 = scmp.ne.s32.totalorder %s102, %s103
      %p115 = scmp.eq.s32.totalorder %s20, 1
      %p116 = por %p114, %p115
      %p118 = scmp.ne.s32.totalorder %s103, %s117
      %p119 = scmp.eq.s32.totalorder %s20, 0
      %p120 = por %p118, %p119
      %s122 = sadd.s32 %s121, 1
      %p125 = scmp.eq.s32.totalorder %s14, 1
      %p126 = scmp.ne.s32.totalorder %s121, %s123
      %p127 = scmp.eq.s32.totalorder %s14, 0
      %p128 = por %p126, %p127
      %p129 = scmp.ne.s32.totalorder %s121, %s123
      %p130 = scmp.eq.s32.totalorder %s19, 1
      %p131 = por %p129, %p130
      %p132 = scmp.ne.s32.totalorder %s123, %s124
      %p133 = scmp.eq.s32.totalorder %s19, 0
      %p134 = por %p132, %p133
      %p135 = scmp.ne.s32.totalorder %s123, %s124
      %p136 = scmp.eq.s32.totalorder %s20, 1
      %p137 = por %p135, %p136
      %p139 = scmp.ne.s32.totalorder %s124, %s138
      %p140 = scmp.eq.s32.totalorder %s20, 0
      %p141 = por %p139, %p140
      %s142 = ssub.s32 %s14, %s21
      %p143 = scmp.eq.s32.totalorder %s142, 0
      %s145 = sadd.s32 %s144, 1
      %s146 = scalar_select %p143, %s144, %s145
      %p149 = pneg %p143
      %p150 = scmp.eq.s32.totalorder %s14, 1
      %p151 = por %p149, %p150
      %p152 = scmp.ne.s32.totalorder %s144, %s147
      %p153 = scmp.eq.s32.totalorder %s14, 0
      %p154 = por %p152, %p153
      %p155 = scmp.ne.s32.totalorder %s144, %s147
      %p156 = scmp.eq.s32.totalorder %s19, 1
      %p157 = por %p155, %p156
      %p158 = scmp.ne.s32.totalorder %s147, %s148
      %p159 = scmp.eq.s32.totalorder %s19, 0
      %p160 = por %p158, %p159
      %p161 = scmp.ne.s32.totalorder %s147, %s148
      %p162 = scmp.eq.s32.totalorder %s20, 1
      %p163 = por %p161, %p162
      %p165 = scmp.ne.s32.totalorder %s148, %s164
      %p166 = scmp.eq.s32.totalorder %s20, 0
      %p167 = por %p165, %p166
      %p168 = scmp.le.s32.totalorder 1, %s14
      %p169 = scmp.lt.s32.totalorder %s14, 3
      %p170 = pnand %p168, %p169
      %p171 = pneg %p170
      // Predicated region
      $region9: #{tpu_custom_call.1} parent=5 // pred_check
        _
      $region10: #{tpu_custom_call.1} parent=5 // pred_check_branch
        %173 = sbr.rel (%p170) target = $region12
      $region11: #{tpu_custom_call.1} parent=5 // pred_region
        %s174 = ssub.s32 %s14, 1
        // Predicated region
        $region13: #{tpu_custom_call.1} parent=11 // pred_check
          %p175 = pneg %p113
        $region14: #{tpu_custom_call.1} parent=11 // pred_check_branch
          %177 = sbr.rel (%p175) target = $region16
        $region15: #{tpu_custom_call.1} parent=11 // pred_region
          _
        $region16: #{tpu_custom_call.1} parent=11 // pred_fallthru
          _
        // Predicated region
        $region17: #{tpu_custom_call.1} parent=11 // pred_check
          %p178 = pneg %p134
        $region18: #{tpu_custom_call.1} parent=11 // pred_check_branch
          %180 = sbr.rel (%p178) target = $region20
        $region19: #{tpu_custom_call.1} parent=11 // pred_region
          _
        $region20: #{tpu_custom_call.1} parent=11 // pred_fallthru
          _
      $region12: #{tpu_custom_call.1} parent=5 // pred_fallthru
        _
      %p181 = scmp.lt.s32.totalorder %s14, 2
      // Predicated region
      $region21: #{tpu_custom_call.1} parent=5 // pred_check
        %p182 = pneg %p181
      $region22: #{tpu_custom_call.1} parent=5 // pred_check_branch
        %184 = sbr.rel (%p182) target = $region24
      $region23: #{tpu_custom_call.1} parent=5 // pred_region
        // Predicated region
        $region25: #{tpu_custom_call.1} parent=23 // pred_check
          %p185 = pneg %p34
        $region26: #{tpu_custom_call.1} parent=23 // pred_check_branch
          %187 = sbr.rel (%p185) target = $region28
        $region27: #{tpu_custom_call.1} parent=23 // pred_region
          %p188 = scmp.lt.s32.totalorder %s14, 1
          %s189 = scalar_select %p188, %s14, 1
          %s190 = smul.addr %s189, 8
          %s191 = scalar_lea.vmem %s0, %s190
        $region28: #{tpu_custom_call.1} parent=23 // pred_fallthru
          _
        // Predicated region
        $region29: #{tpu_custom_call.1} parent=23 // pred_check
          %p192 = pneg %p60
        $region30: #{tpu_custom_call.1} parent=23 // pred_check_branch
          %194 = sbr.rel (%p192) target = $region32
        $region31: #{tpu_custom_call.1} parent=23 // pred_region
          %p195 = scmp.lt.s32.totalorder %s14, 1
          %s196 = scalar_select %p195, %s14, 1
          %s197 = smul.addr %s196, 8
          %s198 = scalar_lea.vmem %s1, %s197
        $region32: #{tpu_custom_call.1} parent=23 // pred_fallthru
          _
        // Predicated region
        $region33: #{tpu_custom_call.1} parent=23 // pred_check
          %p199 = pneg %p86
        $region34: #{tpu_custom_call.1} parent=23 // pred_check_branch
          %201 = sbr.rel (%p199) target = $region36
        $region35: #{tpu_custom_call.1} parent=23 // pred_region
          %p202 = scmp.lt.s32.totalorder %s14, 1
          %s203 = scalar_select %p202, %s14, 1
          %s204 = smul.addr %s203, 8
          %s205 = scalar_lea.vmem %s2, %s204
        $region36: #{tpu_custom_call.1} parent=23 // pred_fallthru
          _
      $region24: #{tpu_custom_call.1} parent=5 // pred_fallthru
        _
      %p206 = scmp.le.s32.totalorder 1, %s14
      %p207 = scmp.lt.s32.totalorder %s14, 3
      %p208 = pnand %p206, %p207
      %p209 = pneg %p208
      // Predicated region
      $region37: #{tpu_custom_call.1} parent=5 // pred_check
        _
      $region38: #{tpu_custom_call.1} parent=5 // pred_check_branch
        %211 = sbr.rel (%p208) target = $region40
      $region39: #{tpu_custom_call.1} parent=5 // pred_region
        %s212 = ssub.s32 %s14, 1
        %p213 = scmp.lt.s32.totalorder %s19, 1
        %s214 = scalar_select %p213, %s19, 1
        %s215 = smul.addr %s214, 8
        %s216 = scalar_lea.vmem %s0, %s215
        %p217 = pneg %p40
        %p218 = pneg %p37
        %p219 = scmp.lt.s32.totalorder %s19, 1
        %s220 = scalar_select %p219, %s19, 1
        %s221 = smul.addr %s220, 8
        %s222 = scalar_lea.vmem %s1, %s221
        %p223 = pneg %p66
        %p224 = pneg %p63
        %p225 = scmp.lt.s32.totalorder %s19, 1
        %s226 = scalar_select %p225, %s19, 1
        %s227 = smul.addr %s226, 8
        %s228 = scalar_lea.vmem %s2, %s227
        %p229 = pneg %p92
        %p230 = pneg %p89
        %p231 = pneg %p113
        %p232 = pneg %p110
        %p233 = pneg %p134
        %p234 = pneg %p131
        %p235 = pneg %p160
        %p236 = pneg %p157
        %s237 = sand.u32 %s147, 1
        %s238 = scalar_lea.sflag [#allocation3], %s237
        %s239 = sand.u32 %s147, 1
        %s240 = smul.addr %s239, 8
        %s241 = scalar_lea.vmem [#allocation2], %s240
        %p242 = scmp.lt.s32.totalorder %s19, 1
        %s243 = scalar_select %p242, %s19, 1
        %s244 = smul.addr %s243, 8
        %s245 = scalar_lea.vmem %s0, %s244
        %p246 = scmp.lt.s32.totalorder %s19, 1
        %s247 = scalar_select %p246, %s19, 1
        %s248 = smul.addr %s247, 8
        %s249 = scalar_lea.vmem %s1, %s248
        %p250 = scmp.lt.s32.totalorder %s19, 1
        %s251 = scalar_select %p250, %s19, 1
        %s252 = smul.addr %s251, 8
        %s253 = scalar_lea.vmem %s2, %s252
        %v254 = vld [vmem:[%s245] sm:$0xff]
        %v255 = vld [vmem:[%s253] sm:$0xff]
        %v256 = vld [vmem:[%s3] sm:$0xff]
        %v257 = vld [vmem:[%s3 + $0x8] sm:$0xff]
        %v258 = vld [vmem:[%s4] sm:$0x1]
        %v259 = vld [vmem:[%s249] sm:$0xff]
        %261 = vset.pattern.permute.xlu0 0
        %262 = vperm.xlu0 %261, %v255
        %v263 = vpop.permute.xlu0 %262
        %v265 = vmul.f32 %v263, %v254
        %vm266 = vcmask 64512
        %v268 = vsel %vm266, %v259, 0
        %270 = vmatprep.subr.mxu0 0.0
        %271 = vmatpush1.msra.mxu0 0.0
        %272 = vmatprep.subr.mxu0 0.0
        %273 = vmatpush1.msra.mxu0 0.0
        %274 = vmatprep.subr.mxu0 0.0
        %275 = vmatpush1.msra.mxu0 0.0
        %276 = vmatprep.subr.mxu0 0.0
        %277 = vmatpush1.msra.mxu0 0.0
        %278 = vmatprep.subr.mxu0 0.0
        %279 = vmatpush1.msra.mxu0 0.0
        %280 = vmatprep.subr.mxu0 0.0
        %281 = vmatpush1.msra.mxu0 0.0
        %282 = vmatprep.subr.mxu0 0.0
        %283 = vmatpush1.msra.mxu0 0.0
        %284 = vmatprep.subr.mxu0 0.0
        %285 = vmatpush1.msra.mxu0 0.0
        %286 = vmatprep.subr.mxu0 0.0
        %287 = vmatpush1.msra.mxu0 0.0
        %288 = vmatprep.subr.mxu0 0.0
        %289 = vmatpush1.msra.mxu0 0.0
        %290 = vmatprep.subr.mxu0 0.0
        %291 = vmatpush1.msra.mxu0 0.0
        %292 = vmatprep.subr.mxu0 0.0
        %293 = vmatpush1.msra.mxu0 0.0
        %294 = vmatprep.subr.mxu0 0.0
        %295 = vmatpush1.msra.mxu0 0.0
        %296 = vmatprep.subr.mxu0 0.0
        %297 = vmatpush1.msra.mxu0 0.0
        %298 = vmatprep.subr.mxu0 0.0
        %299 = vmatpush1.msra.mxu0 0.0
        %300 = vmatprep.subr.mxu0 0.0
        %301 = vmatpush1.msra.mxu0 %v265
        %302 = vmatprep.subr.mxu0 0.0
        %303 = vmatpush2.msra.mxu0 0.0
        %304 = vmatprep.subr.mxu0 0.0
        %305 = vmatpush2.msra.mxu0 0.0
        %306 = vmatprep.subr.mxu0 0.0
        %307 = vmatpush2.msra.mxu0 0.0
        %308 = vmatprep.subr.mxu0 0.0
        %309 = vmatpush2.msra.mxu0 0.0
        %310 = vmatprep.subr.mxu0 0.0
        %311 = vmatpush2.msra.mxu0 0.0
        %312 = vmatprep.subr.mxu0 0.0
        %313 = vmatpush2.msra.mxu0 0.0
        %314 = vmatprep.subr.mxu0 0.0
        %315 = vmatpush2.msra.mxu0 0.0
        %316 = vmatprep.subr.mxu0 0.0
        %317 = vmatpush2.msra.mxu0 0.0
        %318 = vmatprep.subr.mxu0 0.0
        %319 = vmatpush2.msra.mxu0 0.0
        %320 = vmatprep.subr.mxu0 0.0
        %321 = vmatpush2.msra.mxu0 0.0
        %322 = vmatprep.subr.mxu0 0.0
        %323 = vmatpush2.msra.mxu0 0.0
        %324 = vmatprep.subr.mxu0 0.0
        %325 = vmatpush2.msra.mxu0 0.0
        %326 = vmatprep.subr.mxu0 0.0
        %327 = vmatpush2.msra.mxu0 0.0
        %328 = vmatprep.subr.mxu0 0.0
        %329 = vmatpush2.msra.mxu0 0.0
        %330 = vmatprep.subr.mxu0 0.0
        %331 = vmatpush2.msra.mxu0 0.0
        %332 = vmatprep.subr.mxu0 0.0
        %333 = vmatpush2.msra.mxu0 0.0
        %334 = vmatprep.mubr.f32.mxu0 0.0
        %335 = vmatmul.mubr.f32.gmra.mxu0 %v268
        %v336 = vpop.f32.mrf.mxu0
        %v337 = vadd.f32 0.0, %v336
        %v338 = vpop.f32.mrf.mxu0
        %339 = vdwg.mxu0
        %v340 = vmul.f32 %v263, %v337
        %v342 = vlaneseq
        %v343 = vshrl.u32 %v342, 7
        %v344 = vsub.s32 0, %v343
        %v345 = vrot.slane %v258, %v344
        %vm347 = vcmask 130048
        %v349 = vsel %vm347, %v340, 0
        %351 = vmatprep.subr.mxu0 0.0
        %352 = vmatpush1.msra.mxu0 0.0
        %353 = vmatprep.subr.mxu0 0.0
        %354 = vmatpush1.msra.mxu0 0.0
        %355 = vmatprep.subr.mxu0 0.0
        %356 = vmatpush1.msra.mxu0 0.0
        %357 = vmatprep.subr.mxu0 0.0
        %358 = vmatpush1.msra.mxu0 0.0
        %359 = vmatprep.subr.mxu0 0.0
        %360 = vmatpush1.msra.mxu0 0.0
        %361 = vmatprep.subr.mxu0 0.0
        %362 = vmatpush1.msra.mxu0 0.0
        %363 = vmatprep.subr.mxu0 0.0
        %364 = vmatpush1.msra.mxu0 0.0
        %365 = vmatprep.subr.mxu0 0.0
        %366 = vmatpush1.msra.mxu0 0.0
        %367 = vmatprep.subr.mxu0 0.0
        %368 = vmatpush1.msra.mxu0 0.0
        %369 = vmatprep.subr.mxu0 0.0
        %370 = vmatpush1.msra.mxu0 0.0
        %371 = vmatprep.subr.mxu0 0.0
        %372 = vmatpush1.msra.mxu0 0.0
        %373 = vmatprep.subr.mxu0 0.0
        %374 = vmatpush1.msra.mxu0 0.0
        %375 = vmatprep.subr.mxu0 0.0
        %376 = vmatpush1.msra.mxu0 0.0
        %377 = vmatprep.subr.mxu0 0.0
        %378 = vmatpush1.msra.mxu0 0.0
        %379 = vmatprep.subr.mxu0 0.0
        %380 = vmatpush1.msra.mxu0 %v257
        %381 = vmatprep.subr.mxu0 0.0
        %382 = vmatpush1.msra.mxu0 %v256
        %383 = vmatprep.subr.mxu0 0.0
        %384 = vmatpush2.msra.mxu0 0.0
        %385 = vmatprep.subr.mxu0 0.0
        %386 = vmatpush2.msra.mxu0 0.0
        %387 = vmatprep.subr.mxu0 0.0
        %388 = vmatpush2.msra.mxu0 0.0
        %389 = vmatprep.subr.mxu0 0.0
        %390 = vmatpush2.msra.mxu0 0.0
        %391 = vmatprep.subr.mxu0 0.0
        %392 = vmatpush2.msra.mxu0 0.0
        %393 = vmatprep.subr.mxu0 0.0
        %394 = vmatpush2.msra.mxu0 0.0
        %395 = vmatprep.subr.mxu0 0.0
        %396 = vmatpush2.msra.mxu0 0.0
        %397 = vmatprep.subr.mxu0 0.0
        %398 = vmatpush2.msra.mxu0 0.0
        %399 = vmatprep.subr.mxu0 0.0
        %400 = vmatpush2.msra.mxu0 0.0
        %401 = vmatprep.subr.mxu0 0.0
        %402 = vmatpush2.msra.mxu0 0.0
        %403 = vmatprep.subr.mxu0 0.0
        %404 = vmatpush2.msra.mxu0 0.0
        %405 = vmatprep.subr.mxu0 0.0
        %406 = vmatpush2.msra.mxu0 0.0
        %407 = vmatprep.subr.mxu0 0.0
        %408 = vmatpush2.msra.mxu0 0.0
        %409 = vmatprep.subr.mxu0 0.0
        %410 = vmatpush2.msra.mxu0 0.0
        %411 = vmatprep.subr.mxu0 0.0
        %412 = vmatpush2.msra.mxu0 0.0
        %413 = vmatprep.subr.mxu0 0.0
        %414 = vmatpush2.msra.mxu0 0.0
        %415 = vmatprep.mubr.f32.mxu0 0.0
        %416 = vmatmul.mubr.f32.gmra.mxu0 %v349
        %v417 = vpop.f32.mrf.mxu0
        %v418 = vadd.f32 %v345, %v417
        %v419 = vpop.f32.mrf.mxu0
        %420 = vdwg.mxu0
        %vm421 = vcmask 261120
        %422 = vst.msk [vmem:[%s241] sm:$0xff] %vm421, %v418
        %s423 = sand.u32 %s147, 1
        %s424 = scalar_lea.sflag [#allocation3], %s423
        %s425 = sand.u32 %s147, 1
        %s426 = smul.addr %s425, 8
        %s427 = scalar_lea.vmem [#allocation2], %s426
        // Predicated region
        $region41: #{tpu_custom_call.1} parent=39 // pred_check
          %p428 = pneg %p157
        $region42: #{tpu_custom_call.1} parent=39 // pred_check_branch
          %430 = sbr.rel (%p428) target = $region44
        $region43: #{tpu_custom_call.1} parent=39 // pred_region
          %s432 = ssub.s32 128, 128
          %433 = vsyncadd %s424, %s432
          %s434 = smul.addr %s19, 128
          %s435 = scalar_lea.hbm %s5, %s434
          %s437 = sshll.u32 %s427, 4
          %s438 = int_to_ptr.vmem [resolvable:$true] %s437
          %440 = dma.vmem_to_hbm [thread:$0]  %s438, 128, %s435, %s424
        $region44: #{tpu_custom_call.1} parent=39 // pred_fallthru
          _
      $region40: #{tpu_custom_call.1} parent=5 // pred_fallthru
        _
      %p441 = scmp.le.s32.totalorder 2, %s14
      // Predicated region
      $region45: #{tpu_custom_call.1} parent=5 // pred_check
        %p442 = pneg %p441
      $region46: #{tpu_custom_call.1} parent=5 // pred_check_branch
        %444 = sbr.rel (%p442) target = $region48
      $region47: #{tpu_custom_call.1} parent=5 // pred_region
        %s445 = ssub.s32 %s14, 2
        // Predicated region
        $region49: #{tpu_custom_call.1} parent=47 // pred_check
          %p446 = pneg %p163
        $region50: #{tpu_custom_call.1} parent=47 // pred_check_branch
          %448 = sbr.rel (%p446) target = $region52
        $region51: #{tpu_custom_call.1} parent=47 // pred_region
          %s449 = sand.u32 %s148, 1
          %s450 = scalar_lea.sflag [#allocation3], %s449
          %s451 = sand.u32 %s148, 1
          %s452 = smul.addr %s451, 8
          %s453 = scalar_lea.vmem [#allocation2], %s452
          %454 = dma.done %s450, 128
        $region52: #{tpu_custom_call.1} parent=47 // pred_fallthru
          _
      $region48: #{tpu_custom_call.1} parent=5 // pred_fallthru
        _
    $region6: #{tpu_custom_call.1} parent=1 // loop_footer
      %s18 = sadd.s32 1, %s14
    $region7: #{tpu_custom_call.1} parent=1 // loop_footer_branch
      %13 = sbr.rel target = $region3
    $region8: #{tpu_custom_call.1} parent=1 // loop_exit
      _
    %455 = vsyncpa [#allocation3], 1
    %s456 = scalar_lea.sflag [#allocation3], 1
    %457 = vsyncpa %s456, 1

</llo_original>
